<compile_context>
chip_gen: v7x
topology: tpu7x:2x2x1
jax: 0.10.0
libtpu: 0.0.40
codegen_flags: <defaults>
</compile_context>

<pallas_src>
import math

import jax
import jax.numpy as jnp
import numpy as np
from jax.experimental import pallas as pl
from jax.experimental.pallas import tpu as pltpu

CONV_OUT = 128                            # BasicConv2d out_channels
POOL_HW = 4                               # adaptive_avg_pool2d target (4, 4)
FC1_IN = CONV_OUT * POOL_HW * POOL_HW     # 2048
FC1_OUT = 1024
BN_EPS = 1e-3


def _adaptive_pool_matrix_1d(size, out):
    """P[h, i] = 1/len(bin_i) if h is inside PyTorch adaptive-pool bin i."""
    i = np.arange(out)
    start = np.floor(i * size / out).astype(np.int64)
    end = np.ceil((i + 1) * size / out).astype(np.int64)
    h = np.arange(size)
    member = (h[:, None] >= start[None, :]) & (h[:, None] < end[None, :])
    return member.astype(np.float32) / (end - start)[None, :].astype(np.float32)


def frontend_kernel(x_ref, pool_ref, wc_ref, bnb_ref, feat_ref):
    """Per-sample: adaptive_avg_pool2d(4,4) + 1x1 conv (BN scale folded) + bias + ReLU."""
    # pooling as a matmul: (16, HW) @ (HW, Cin) -> (16, Cin)
    pooled = jnp.dot(pool_ref[...], x_ref[0], preferred_element_type=jnp.float32)
    # 1x1 conv (bias-free, BN scale folded into the bf16 weight): (16, Cin) @ (Cin, 128)
    h = jnp.dot(pooled.astype(jnp.bfloat16), wc_ref[...],
                preferred_element_type=jnp.float32)
    # folded BN bias + ReLU in f32; cast to bf16 only as the MXU-facing feature output
    feat_ref[0] = jnp.maximum(h + bnb_ref[...], 0.0).astype(jnp.bfloat16)


def mlp_kernel(feat_ref, w1_ref, b1_ref, w2_ref, b2_ref, o_ref, acc_ref):
    """fc1 + ReLU + fc2, streamed over fc1-output tiles; fc2 accumulated in f32."""
    @pl.when(pl.program_id(0) == 0)
    def _():
        acc_ref[...] = jnp.zeros_like(acc_ref)

    h1 = jnp.maximum(
        jnp.dot(feat_ref[...], w1_ref[...], preferred_element_type=jnp.float32)
        + b1_ref[...], 0.0)
    acc_ref[...] += jnp.dot(h1.astype(jnp.bfloat16), w2_ref[...],
                            preferred_element_type=jnp.float32)
    o_ref[...] = acc_ref[...] + b2_ref[...]


def inception_aux_forward(x, params, *, fc1_tile=256):
    """x: (N, Cin, H, W) float32 NCHW, params in PyTorch tensor conventions."""
    n, cin, hh, ww = x.shape
    hw = hh * ww
    s16 = POOL_HW * POOL_HW
    num_classes = params["w2"].shape[0]
    nc_pad = max(128, ((num_classes + 127) // 128) * 128)   # lane-dense fc2 output

    # ---- wrapper: layout plumbing + parameter folding (no FLOP hoisting) ----
    x3 = jnp.transpose(x, (0, 2, 3, 1)).reshape(n, hw, cin)            # (N, HW, Cin)

    ph = _adaptive_pool_matrix_1d(hh, POOL_HW)                         # (H, 4)
    pw = _adaptive_pool_matrix_1d(ww, POOL_HW)                         # (W, 4)
    pool_t = jnp.asarray(np.kron(ph, pw).T)                            # (16, HW) f32

    scale = params["gamma"] / jnp.sqrt(params["var"] + BN_EPS)         # (128,)
    wc_t = (scale[:, None] * params["wc"][:, :, 0, 0]).T.astype(jnp.bfloat16)  # (Cin,128)
    bnb = (params["beta"] - params["mean"] * scale)[None, :]           # (1, 128) f32

    # permute fc1 input features: torch index c*16+s  ->  kernel index s*128+c
    w1p = (params["w1"].T
           .reshape(CONV_OUT, s16, FC1_OUT)
           .transpose(1, 0, 2)
           .reshape(FC1_IN, FC1_OUT)).astype(jnp.bfloat16)             # (2048, 1024)
    b1 = params["b1"][None, :]                                         # (1, 1024) f32
    w2p = jnp.pad(params["w2"].T,
                  ((0, 0), (0, nc_pad - num_classes))).astype(jnp.bfloat16)  # (1024, nc_pad)
    b2 = jnp.pad(params["b2"], (0, nc_pad - num_classes))[None, :]     # (1, nc_pad) f32

    # ---- stage 1: pool + 1x1 conv + BN + ReLU, one sample per grid step ----
    feat3 = pl.pallas_call(
        frontend_kernel,
        out_shape=jax.ShapeDtypeStruct((n, s16, CONV_OUT), jnp.bfloat16),
        grid_spec=pltpu.PrefetchScalarGridSpec(
            num_scalar_prefetch=0,
            grid=(n,),
            in_specs=[
                pl.BlockSpec((1, hw, cin), lambda i: (i, 0, 0)),
                pl.BlockSpec((s16, hw), lambda i: (0, 0)),
                pl.BlockSpec((cin, CONV_OUT), lambda i: (0, 0)),
                pl.BlockSpec((1, CONV_OUT), lambda i: (0, 0)),
            ],
            out_specs=pl.BlockSpec((1, s16, CONV_OUT), lambda i: (i, 0, 0)),
        ),
        compiler_params=pltpu.CompilerParams(dimension_semantics=("parallel",)),
    )(x3, pool_t, wc_t, bnb)

    # torch.flatten feature order is handled by the w1 permutation; this reshape is
    # pure layout plumbing done outside the kernel.
    feat = feat3.reshape(n, FC1_IN)

    # ---- stage 2: fc1 + ReLU + fc2, w1/w2 streamed in fc1-output tiles ----
    assert FC1_OUT % fc1_tile == 0
    out_pad = pl.pallas_call(
        mlp_kernel,
        out_shape=jax.ShapeDtypeStruct((n, nc_pad), jnp.float32),
        grid_spec=pltpu.PrefetchScalarGridSpec(
            num_scalar_prefetch=0,
            grid=(FC1_OUT // fc1_tile,),
            in_specs=[
                pl.BlockSpec((n, FC1_IN), lambda j: (0, 0)),
                pl.BlockSpec((FC1_IN, fc1_tile), lambda j: (0, j)),
                pl.BlockSpec((1, fc1_tile), lambda j: (0, j)),
                pl.BlockSpec((fc1_tile, nc_pad), lambda j: (j, 0)),
                pl.BlockSpec((1, nc_pad), lambda j: (0, 0)),
            ],
            out_specs=pl.BlockSpec((n, nc_pad), lambda j: (0, 0)),
            scratch_shapes=[pltpu.VMEM((n, nc_pad), jnp.float32)],
        ),
        compiler_params=pltpu.CompilerParams(dimension_semantics=("arbitrary",)),
    )(feat, w1p, b1, w2p, b2)

    return out_pad[:, :num_classes]


def inception_aux_reference(x, params):
    """Pure-JAX f32 reference mirroring the PyTorch forward (H, W divisible by 4)."""
    n, c, hh, ww = x.shape
    assert hh % POOL_HW == 0 and ww % POOL_HW == 0
    xp = x.reshape(n, c, POOL_HW, hh // POOL_HW, POOL_HW, ww // POOL_HW).mean(axis=(3, 5))
    wc2d = params["wc"][:, :, 0, 0]
    h = jnp.einsum("oc,ncij->noij", wc2d, xp)
    scale = params["gamma"] / jnp.sqrt(params["var"] + BN_EPS)
    h = (h - params["mean"][None, :, None, None]) * scale[None, :, None, None] \
        + params["beta"][None, :, None, None]
    h = jnp.maximum(h, 0.0)
    f = h.reshape(n, -1)
    h1 = jnp.maximum(f @ params["w1"].T + params["b1"], 0.0)
    return h1 @ params["w2"].T + params["b2"]


if __name__ == "__main__":
    N, CIN, H, W = 2, 4, 16, 16
    NUM_CLASSES = 10

    key = jax.random.PRNGKey(0)
    ks = jax.random.split(key, 10)
    x = jax.random.normal(ks[0], (N, CIN, H, W), jnp.float32)
    params = dict(
        wc=jax.random.normal(ks[1], (CONV_OUT, CIN, 1, 1), jnp.float32)
        / math.sqrt(CIN),
        gamma=1.0 + 0.1 * jax.random.normal(ks[2], (CONV_OUT,), jnp.float32),
        beta=0.1 * jax.random.normal(ks[3], (CONV_OUT,), jnp.float32),
        mean=0.1 * jax.random.normal(ks[4], (CONV_OUT,), jnp.float32),
        var=jax.random.uniform(ks[5], (CONV_OUT,), jnp.float32, 0.5, 1.5),
        w1=jax.random.normal(ks[6], (FC1_OUT, FC1_IN), jnp.float32)
        / math.sqrt(FC1_IN),
        b1=0.01 * jax.random.normal(ks[7], (FC1_OUT,), jnp.float32),
        w2=jax.random.normal(ks[8], (NUM_CLASSES, FC1_OUT), jnp.float32)
        / math.sqrt(FC1_OUT),
        b2=0.01 * jax.random.normal(ks[9], (NUM_CLASSES,), jnp.float32),
    )

    out = jax.block_until_ready(inception_aux_forward(x, params))
    ref = jax.block_until_ready(inception_aux_reference(x, params))

    assert out.shape == (N, NUM_CLASSES) and out.dtype == jnp.float32
    assert jnp.allclose(out, ref, rtol=2e-2, atol=2e-2), \
        float(jnp.max(jnp.abs(out - ref)))
    print("KERNEL_OK")
</pallas_src>

<mosaic_0001>
module attributes {stable_mosaic.version = 11 : i64} {
  func.func @frontend_kernel(%arg0: i32, %arg1: memref<1x256x4xf32, #tpu.memory_space<vmem>>, %arg2: memref<16x256xf32, #tpu.memory_space<vmem>>, %arg3: memref<4x128xbf16, #tpu.memory_space<vmem>>, %arg4: memref<1x128xf32, #tpu.memory_space<vmem>>, %arg5: memref<1x16x128xbf16, #tpu.memory_space<vmem>>) attributes {dimension_semantics = [#tpu.dimension_semantics<parallel>], iteration_bounds = array<i64: 2>, scalar_prefetch = 0 : i64, scratch_operands = 0 : i64, tpu.core_type = #tpu.core_type<tc>, window_params = [{transform_indices = @transform_0, window_bounds = array<i64: 1, 256, 4>}, {pipeline_mode = #tpu.pipeline_mode<synchronous>, transform_indices = @transform_1, window_bounds = array<i64: 16, 256>}, {pipeline_mode = #tpu.pipeline_mode<synchronous>, transform_indices = @transform_2, window_bounds = array<i64: 4, 128>}, {pipeline_mode = #tpu.pipeline_mode<synchronous>, transform_indices = @transform_3, window_bounds = array<i64: 1, 128>}, {transform_indices = @transform_4, window_bounds = array<i64: 1, 16, 128>}]} {
    %c0 = arith.constant 0 : index
    %c0_0 = arith.constant 0 : index
    %0 = vector.load %arg2[%c0, %c0_0] : memref<16x256xf32, #tpu.memory_space<vmem>>, vector<16x256xf32>
    %c0_1 = arith.constant 0 : index
    %c0_2 = arith.constant 0 : index
    %c0_3 = arith.constant 0 : index
    %1 = vector.load %arg1[%c0_1, %c0_2, %c0_3] : memref<1x256x4xf32, #tpu.memory_space<vmem>>, vector<1x256x4xf32>
    %2 = vector.shape_cast %1 : vector<1x256x4xf32> to vector<256x4xf32>
    %cst = arith.constant dense<0.000000e+00> : vector<16x4xf32>
    %3 = tpu.matmul %0, %2, %cst {dimension_numbers = #tpu.dot_dimension_numbers<[1], [0], [0], [1], [0, 0, 1, 1], [], []>} : vector<16x256xf32>, vector<256x4xf32>, vector<16x4xf32> -> vector<16x4xf32>
    %4 = arith.truncf %3 : vector<16x4xf32> to vector<16x4xbf16>
    %c0_4 = arith.constant 0 : index
    %c0_5 = arith.constant 0 : index
    %5 = vector.load %arg3[%c0_4, %c0_5] : memref<4x128xbf16, #tpu.memory_space<vmem>>, vector<4x128xbf16>
    %cst_6 = arith.constant dense<0.000000e+00> : vector<16x128xf32>
    %6 = tpu.matmul %4, %5, %cst_6 {dimension_numbers = #tpu.dot_dimension_numbers<[1], [0], [0], [1], [0, 0, 1, 1], [], []>} : vector<16x4xbf16>, vector<4x128xbf16>, vector<16x128xf32> -> vector<16x128xf32>
    %c0_7 = arith.constant 0 : index
    %c0_8 = arith.constant 0 : index
    %7 = vector.load %arg4[%c0_7, %c0_8] : memref<1x128xf32, #tpu.memory_space<vmem>>, vector<1x128xf32>
    %8 = vector.broadcast %7 : vector<1x128xf32> to vector<16x128xf32>
    %9 = arith.addf %6, %8 : vector<16x128xf32>
    %cst_9 = arith.constant 0.000000e+00 : f32
    %10 = vector.broadcast %cst_9 : f32 to vector<16x128xf32>
    %11 = arith.maximumf %9, %10 : vector<16x128xf32>
    %12 = arith.truncf %11 : vector<16x128xf32> to vector<16x128xbf16>
    %c0_10 = arith.constant 0 : index
    %c0_11 = arith.constant 0 : index
    %c0_12 = arith.constant 0 : index
    %13 = vector.load %arg5[%c0_10, %c0_11, %c0_12] : memref<1x16x128xbf16, #tpu.memory_space<vmem>>, vector<1x16x128xbf16>
    %14 = vector.shape_cast %13 : vector<1x16x128xbf16> to vector<16x128xbf16>
    %15 = vector.shape_cast %12 : vector<16x128xbf16> to vector<1x16x128xbf16>
    tpu.vector_store %arg5[%c0_10, %c0_11, %c0_12], %15 {strides = array<i32>} : memref<1x16x128xbf16, #tpu.memory_space<vmem>>, vector<1x16x128xbf16>,
    return
  }
  func.func @transform_0(%arg0: i32) -> (i32, i32, i32) {
    %c0_i32 = arith.constant 0 : i32
    %c0_i32_0 = arith.constant 0 : i32
    %c0_i32_1 = arith.constant 0 : i32
    return %arg0, %c0_i32, %c0_i32_0 : i32, i32, i32
  }
  func.func @transform_1(%arg0: i32) -> (i32, i32) {
    %c0_i32 = arith.constant 0 : i32
    %c0_i32_0 = arith.constant 0 : i32
    %c0_i32_1 = arith.constant 0 : i32
    return %c0_i32, %c0_i32_0 : i32, i32
  }
  func.func @transform_2(%arg0: i32) -> (i32, i32) {
    %c0_i32 = arith.constant 0 : i32
    %c0_i32_0 = arith.constant 0 : i32
    %c0_i32_1 = arith.constant 0 : i32
    return %c0_i32, %c0_i32_0 : i32, i32
  }
  func.func @transform_3(%arg0: i32) -> (i32, i32) {
    %c0_i32 = arith.constant 0 : i32
    %c0_i32_0 = arith.constant 0 : i32
    %c0_i32_1 = arith.constant 0 : i32
    return %c0_i32, %c0_i32_0 : i32, i32
  }
  func.func @transform_4(%arg0: i32) -> (i32, i32, i32) {
    %c0_i32 = arith.constant 0 : i32
    %c0_i32_0 = arith.constant 0 : i32
    %c0_i32_1 = arith.constant 0 : i32
    return %arg0, %c0_i32, %c0_i32_0 : i32, i32, i32
  }
}

</mosaic_0001>

<llo_original>
// kernel: tpu_custom_call.1
$region0: #{tpu_custom_call.1}
  #allocation0 [shape = 'u32[]', space=smem, size = 0x4, offset = 0x4, fixed_abs, tag = 'smem constant byte address 0x4 - core index']
  #allocation1 [shape = 'u32[144,128]{1,0:T(1,128)}', space=vmem, size = 0x12000, scoped, tag = 'internal scratch']
  %s0 = inlined_call_operand.vmem [shape: f32[2,256,4], index: 0, kind: input, shape index: {}]
  %s1 = inlined_call_operand.vmem [shape: f32[16,256], index: 1, kind: input, shape index: {}]
  %s2 = inlined_call_operand.vmem [shape: bf16[4,128], index: 2, kind: input, shape index: {}]
  %s3 = inlined_call_operand.vmem [shape: f32[1,128], index: 3, kind: input, shape index: {}]
  %s4 = inlined_call_operand.hbm [shape: bf16[2,16,128], index: 4, kind: output, shape index: {}]
  %s5 = sld [smem:[#allocation0]]
  $region49: #{tpu_custom_call.1} parent=0
    _
  %s7 = ssub.s32 1, %s5
  %s8 = scalar_select 0, %s7, %s5
  $region1: #{tpu_custom_call.1} parent=0
    #allocation2 [shape = 'u8[8192]{0}', space=vmem, size = 0x2000, scoped, tag = 'output window, operand 0']
    #allocation3 [shape = 's32[2]{0}', space=sflag, size = 0x8, scoped, tag = 'scoped memory for tpu_custom_call.1']
    %9 = vsyncpa [#allocation3], 0
    %s10 = scalar_lea.sflag [#allocation3], 1
    %11 = vsyncpa %s10, 0
    loop: start=0, step=1, limit=4
    $region2: #{tpu_custom_call.1} parent=1 // loop_pre_header
      _
    $region3: #{tpu_custom_call.1} parent=1 // loop_header
      %s13 = sphi 0, %s17
      %p14 = scmp.ge.s32.totalorder %s13, 4
      %s23 = sphi 0, %s25
      %s26 = sphi 0, %s23
      %s27 = sphi 0, %s26
      %s43 = sphi 0, %s27
      %s47 = sphi 0, %s47
      %s49 = sphi 0, %s47
      %s50 = sphi 0, %s49
      %s64 = sphi 0, %s50
      %s68 = sphi 0, %s68
      %s70 = sphi 0, %s68
      %s71 = sphi 0, %s70
      %s85 = sphi 0, %s71
      %s89 = sphi 0, %s89
      %s91 = sphi 0, %s89
      %s92 = sphi 0, %s91
      %s106 = sphi 0, %s92
      %s112 = sphi 0, %s114
      %s115 = sphi 0, %s112
      %s116 = sphi 0, %s115
      %s132 = sphi 0, %s116
    $region4: #{tpu_custom_call.1} parent=1 // loop_header_branch
      %16 = sbr.rel (%p14) target = $region8
    $region5: #{tpu_custom_call.1} parent=1 // loop_body
      %s18 = ssub.s32 %s13, 1
      %s19 = ssub.s32 %s13, 2
      %s20 = sadd.s32 %s13, 1
      %s21 = ssub.s32 %s13, %s20
      %p22 = scmp.eq.s32.totalorder %s21, 0
      %s24 = sadd.s32 %s23, 1
      %s25 = scalar_select %p22, %s23, %s24
      %p28 = pneg %p22
      %p29 = scmp.eq.s32.totalorder %s13, 1
      %p30 = por %p28, %p29
      %p31 = scmp.ne.s32.totalorder %s23, %s26
      %p32 = scmp.eq.s32.totalorder %s13, 0
      %p33 = por %p31, %p32
      %p34 = scmp.ne.s32.totalorder %s23, %s26
      %p35 = scmp.eq.s32.totalorder %s18, 1
      %p36 = por %p34, %p35
      %p37 = scmp.ne.s32.totalorder %s26, %s27
      %p38 = scmp.eq.s32.totalorder %s18, 0
      %p39 = por %p37, %p38
      %p40 = scmp.ne.s32.totalorder %s26, %s27
      %p41 = scmp.eq.s32.totalorder %s19, 1
      %p42 = por %p40, %p41
      %p44 = scmp.ne.s32.totalorder %s27, %s43
      %p45 = scmp.eq.s32.totalorder %s19, 0
      %p46 = por %p44, %p45
      %s48 = sadd.s32 %s47, 1
      %p51 = scmp.eq.s32.totalorder %s13, 1
      %p52 = scmp.ne.s32.totalorder %s47, %s49
      %p53 = scmp.eq.s32.totalorder %s13, 0
      %p54 = por %p52, %p53
      %p55 = scmp.ne.s32.totalorder %s47, %s49
      %p56 = scmp.eq.s32.totalorder %s18, 1
      %p57 = por %p55, %p56
      %p58 = scmp.ne.s32.totalorder %s49, %s50
      %p59 = scmp.eq.s32.totalorder %s18, 0
      %p60 = por %p58, %p59
      %p61 = scmp.ne.s32.totalorder %s49, %s50
      %p62 = scmp.eq.s32.totalorder %s19, 1
      %p63 = por %p61, %p62
      %p65 = scmp.ne.s32.totalorder %s50, %s64
      %p66 = scmp.eq.s32.totalorder %s19, 0
      %p67 = por %p65, %p66
      %s69 = sadd.s32 %s68, 1
      %p72 = scmp.eq.s32.totalorder %s13, 1
      %p73 = scmp.ne.s32.totalorder %s68, %s70
      %p74 = scmp.eq.s32.totalorder %s13, 0
      %p75 = por %p73, %p74
      %p76 = scmp.ne.s32.totalorder %s68, %s70
      %p77 = scmp.eq.s32.totalorder %s18, 1
      %p78 = por %p76, %p77
      %p79 = scmp.ne.s32.totalorder %s70, %s71
      %p80 = scmp.eq.s32.totalorder %s18, 0
      %p81 = por %p79, %p80
      %p82 = scmp.ne.s32.totalorder %s70, %s71
      %p83 = scmp.eq.s32.totalorder %s19, 1
      %p84 = por %p82, %p83
      %p86 = scmp.ne.s32.totalorder %s71, %s85
      %p87 = scmp.eq.s32.totalorder %s19, 0
      %p88 = por %p86, %p87
      %s90 = sadd.s32 %s89, 1
      %p93 = scmp.eq.s32.totalorder %s13, 1
      %p94 = scmp.ne.s32.totalorder %s89, %s91
      %p95 = scmp.eq.s32.totalorder %s13, 0
      %p96 = por %p94, %p95
      %p97 = scmp.ne.s32.totalorder %s89, %s91
      %p98 = scmp.eq.s32.totalorder %s18, 1
      %p99 = por %p97, %p98
      %p100 = scmp.ne.s32.totalorder %s91, %s92
      %p101 = scmp.eq.s32.totalorder %s18, 0
      %p102 = por %p100, %p101
      %p103 = scmp.ne.s32.totalorder %s91, %s92
      %p104 = scmp.eq.s32.totalorder %s19, 1
      %p105 = por %p103, %p104
      %p107 = scmp.ne.s32.totalorder %s92, %s106
      %p108 = scmp.eq.s32.totalorder %s19, 0
      %p109 = por %p107, %p108
      %s110 = ssub.s32 %s13, %s20
      %p111 = scmp.eq.s32.totalorder %s110, 0
      %s113 = sadd.s32 %s112, 1
      %s114 = scalar_select %p111, %s112, %s113
      %p117 = pneg %p111
      %p118 = scmp.eq.s32.totalorder %s13, 1
      %p119 = por %p117, %p118
      %p120 = scmp.ne.s32.totalorder %s112, %s115
      %p121 = scmp.eq.s32.totalorder %s13, 0
      %p122 = por %p120, %p121
      %p123 = scmp.ne.s32.totalorder %s112, %s115
      %p124 = scmp.eq.s32.totalorder %s18, 1
      %p125 = por %p123, %p124
      %p126 = scmp.ne.s32.totalorder %s115, %s116
      %p127 = scmp.eq.s32.totalorder %s18, 0
      %p128 = por %p126, %p127
      %p129 = scmp.ne.s32.totalorder %s115, %s116
      %p130 = scmp.eq.s32.totalorder %s19, 1
      %p131 = por %p129, %p130
      %p133 = scmp.ne.s32.totalorder %s116, %s132
      %p134 = scmp.eq.s32.totalorder %s19, 0
      %p135 = por %p133, %p134
      %p136 = scmp.le.s32.totalorder 1, %s13
      %p137 = scmp.lt.s32.totalorder %s13, 3
      %p138 = pnand %p136, %p137
      %p139 = pneg %p138
      // Predicated region
      $region9: #{tpu_custom_call.1} parent=5 // pred_check
        _
      $region10: #{tpu_custom_call.1} parent=5 // pred_check_branch
        %141 = sbr.rel (%p138) target = $region12
      $region11: #{tpu_custom_call.1} parent=5 // pred_region
        %s142 = ssub.s32 %s13, 1
        // Predicated region
        $region13: #{tpu_custom_call.1} parent=11 // pred_check
          %p143 = pneg %p60
        $region14: #{tpu_custom_call.1} parent=11 // pred_check_branch
          %145 = sbr.rel (%p143) target = $region16
        $region15: #{tpu_custom_call.1} parent=11 // pred_region
          _
        $region16: #{tpu_custom_call.1} parent=11 // pred_fallthru
          _
        // Predicated region
        $region17: #{tpu_custom_call.1} parent=11 // pred_check
          %p146 = pneg %p81
        $region18: #{tpu_custom_call.1} parent=11 // pred_check_branch
          %148 = sbr.rel (%p146) target = $region20
        $region19: #{tpu_custom_call.1} parent=11 // pred_region
          _
        $region20: #{tpu_custom_call.1} parent=11 // pred_fallthru
          _
        // Predicated region
        $region21: #{tpu_custom_call.1} parent=11 // pred_check
          %p149 = pneg %p102
        $region22: #{tpu_custom_call.1} parent=11 // pred_check_branch
          %151 = sbr.rel (%p149) target = $region24
        $region23: #{tpu_custom_call.1} parent=11 // pred_region
          _
        $region24: #{tpu_custom_call.1} parent=11 // pred_fallthru
          _
      $region12: #{tpu_custom_call.1} parent=5 // pred_fallthru
        _
      %p152 = scmp.lt.s32.totalorder %s13, 2
      // Predicated region
      $region25: #{tpu_custom_call.1} parent=5 // pred_check
        %p153 = pneg %p152
      $region26: #{tpu_custom_call.1} parent=5 // pred_check_branch
        %155 = sbr.rel (%p153) target = $region28
      $region27: #{tpu_custom_call.1} parent=5 // pred_region
        // Predicated region
        $region29: #{tpu_custom_call.1} parent=27 // pred_check
          %p156 = pneg %p33
        $region30: #{tpu_custom_call.1} parent=27 // pred_check_branch
          %158 = sbr.rel (%p156) target = $region32
        $region31: #{tpu_custom_call.1} parent=27 // pred_region
          %p159 = scmp.lt.s32.totalorder %s13, 1
          %s160 = scalar_select %p159, %s13, 1
          %s161 = smul.addr %s160, 32
          %s162 = smul.addr %s161, 8
          %s163 = scalar_lea.vmem %s0, %s162
        $region32: #{tpu_custom_call.1} parent=27 // pred_fallthru
          _
      $region28: #{tpu_custom_call.1} parent=5 // pred_fallthru
        _
      %p164 = scmp.le.s32.totalorder 1, %s13
      %p165 = scmp.lt.s32.totalorder %s13, 3
      %p166 = pnand %p164, %p165
      %p167 = pneg %p166
      // Predicated region
      $region33: #{tpu_custom_call.1} parent=5 // pred_check
        _
      $region34: #{tpu_custom_call.1} parent=5 // pred_check_branch
        %169 = sbr.rel (%p166) target = $region36
      $region35: #{tpu_custom_call.1} parent=5 // pred_region
        %s170 = ssub.s32 %s13, 1
        %p171 = scmp.lt.s32.totalorder %s18, 1
        %s172 = scalar_select %p171, %s18, 1
        %s173 = smul.addr %s172, 32
        %s174 = smul.addr %s173, 8
        %s175 = scalar_lea.vmem %s0, %s174
        %p176 = pneg %p39
        %p177 = pneg %p36
        %p178 = pneg %p60
        %p179 = pneg %p57
        %p180 = pneg %p81
        %p181 = pneg %p78
        %p182 = pneg %p102
        %p183 = pneg %p99
        %p184 = pneg %p128
        %p185 = pneg %p125
        %s186 = sand.u32 %s115, 1
        %s187 = scalar_lea.sflag [#allocation3], %s186
        %s188 = sand.u32 %s115, 1
        %s189 = smul.addr %s188, 8
        %s190 = scalar_lea.vmem [#allocation2], %s189
        %p191 = scmp.lt.s32.totalorder %s18, 1
        %s192 = scalar_select %p191, %s18, 1
        %s193 = smul.addr %s192, 32
        %s194 = smul.addr %s193, 8
        %s195 = scalar_lea.vmem %s0, %s194
        %v197 = vld [vmem:[%s1] sm:$0xff]
        %v198 = vld [vmem:[%s1 + $0x8] sm:$0xff]
        %v199 = vld [vmem:[%s1 + $0x10] sm:$0xff]
        %v200 = vld [vmem:[%s1 + $0x18] sm:$0xff]
        %v201 = vld [vmem:[%s195] sm:$0xff]
        %v202 = vld [vmem:[%s195 + $0x8] sm:$0xff]
        %v203 = vld [vmem:[%s195 + $0x10] sm:$0xff]
        %v204 = vld [vmem:[%s195 + $0x18] sm:$0xff]
        %v205 = vld [vmem:[%s195 + $0x20] sm:$0xff]
        %v206 = vld [vmem:[%s195 + $0x28] sm:$0xff]
        %v207 = vld [vmem:[%s195 + $0x30] sm:$0xff]
        %v208 = vld [vmem:[%s195 + $0x38] sm:$0xff]
        %v209 = vld [vmem:[%s195 + $0x40] sm:$0xff]
        %v210 = vld [vmem:[%s195 + $0x48] sm:$0xff]
        %v211 = vld [vmem:[%s195 + $0x50] sm:$0xff]
        %v212 = vld [vmem:[%s195 + $0x58] sm:$0xff]
        %v213 = vld [vmem:[%s195 + $0x60] sm:$0xff]
        %v214 = vld [vmem:[%s195 + $0x68] sm:$0xff]
        %v215 = vld [vmem:[%s195 + $0x70] sm:$0xff]
        %v216 = vld [vmem:[%s195 + $0x78] sm:$0xff]
        %v217 = vld [vmem:[%s195 + $0x80] sm:$0xff]
        %v218 = vld [vmem:[%s195 + $0x88] sm:$0xff]
        %v219 = vld [vmem:[%s195 + $0x90] sm:$0xff]
        %v220 = vld [vmem:[%s195 + $0x98] sm:$0xff]
        %v221 = vld [vmem:[%s195 + $0xa0] sm:$0xff]
        %v222 = vld [vmem:[%s195 + $0xa8] sm:$0xff]
        %v223 = vld [vmem:[%s195 + $0xb0] sm:$0xff]
        %v224 = vld [vmem:[%s195 + $0xb8] sm:$0xff]
        %v225 = vld [vmem:[%s195 + $0xc0] sm:$0xff]
        %v226 = vld [vmem:[%s195 + $0xc8] sm:$0xff]
        %v227 = vld [vmem:[%s195 + $0xd0] sm:$0xff]
        %v228 = vld [vmem:[%s195 + $0xd8] sm:$0xff]
        %v229 = vld [vmem:[%s195 + $0xe0] sm:$0xff]
        %v230 = vld [vmem:[%s195 + $0xe8] sm:$0xff]
        %v231 = vld [vmem:[%s195 + $0xf0] sm:$0xff]
        %v232 = vld [vmem:[%s195 + $0xf8] sm:$0xff]
        %233 = vmatprep.subr.mxu0 0.0
        %234 = vmatpush1.msra.mxu0 %v201
        %235 = vmatprep.subr.mxu0 0.0
        %236 = vmatpush1.msra.mxu0 %v202
        %237 = vmatprep.subr.mxu0 0.0
        %238 = vmatpush1.msra.mxu0 %v203
        %239 = vmatprep.subr.mxu0 0.0
        %240 = vmatpush1.msra.mxu0 %v204
        %241 = vmatprep.subr.mxu0 0.0
        %242 = vmatpush1.msra.mxu0 %v205
        %243 = vmatprep.subr.mxu0 0.0
        %244 = vmatpush1.msra.mxu0 %v206
        %245 = vmatprep.subr.mxu0 0.0
        %246 = vmatpush1.msra.mxu0 %v207
        %247 = vmatprep.subr.mxu0 0.0
        %248 = vmatpush1.msra.mxu0 %v208
        %249 = vmatprep.subr.mxu0 0.0
        %250 = vmatpush1.msra.mxu0 %v209
        %251 = vmatprep.subr.mxu0 0.0
        %252 = vmatpush1.msra.mxu0 %v210
        %253 = vmatprep.subr.mxu0 0.0
        %254 = vmatpush1.msra.mxu0 %v211
        %255 = vmatprep.subr.mxu0 0.0
        %256 = vmatpush1.msra.mxu0 %v212
        %257 = vmatprep.subr.mxu0 0.0
        %258 = vmatpush1.msra.mxu0 %v213
        %259 = vmatprep.subr.mxu0 0.0
        %260 = vmatpush1.msra.mxu0 %v214
        %261 = vmatprep.subr.mxu0 0.0
        %262 = vmatpush1.msra.mxu0 %v215
        %263 = vmatprep.subr.mxu0 0.0
        %264 = vmatpush1.msra.mxu0 %v216
        %265 = vmatprep.subr.mxu0 0.0
        %266 = vmatpush1.msra.mxu0 %v217
        %267 = vmatprep.subr.mxu0 0.0
        %268 = vmatpush1.msra.mxu0 %v218
        %269 = vmatprep.subr.mxu0 0.0
        %270 = vmatpush1.msra.mxu0 %v219
        %271 = vmatprep.subr.mxu0 0.0
        %272 = vmatpush1.msra.mxu0 %v220
        %273 = vmatprep.subr.mxu0 0.0
        %274 = vmatpush1.msra.mxu0 %v221
        %275 = vmatprep.subr.mxu0 0.0
        %276 = vmatpush1.msra.mxu0 %v222
        %277 = vmatprep.subr.mxu0 0.0
        %278 = vmatpush1.msra.mxu0 %v223
        %279 = vmatprep.subr.mxu0 0.0
        %280 = vmatpush1.msra.mxu0 %v224
        %281 = vmatprep.subr.mxu0 0.0
        %282 = vmatpush1.msra.mxu0 %v225
        %283 = vmatprep.subr.mxu0 0.0
        %284 = vmatpush1.msra.mxu0 %v226
        %285 = vmatprep.subr.mxu0 0.0
        %286 = vmatpush1.msra.mxu0 %v227
        %287 = vmatprep.subr.mxu0 0.0
        %288 = vmatpush1.msra.mxu0 %v228
        %289 = vmatprep.subr.mxu0 0.0
        %290 = vmatpush1.msra.mxu0 %v229
        %291 = vmatprep.subr.mxu0 0.0
        %292 = vmatpush1.msra.mxu0 %v230
        %293 = vmatprep.subr.mxu0 0.0
        %294 = vmatpush1.msra.mxu0 %v231
        %295 = vmatprep.subr.mxu0 0.0
        %296 = vmatpush1.msra.mxu0 %v232
        %297 = vmatprep.mubr.f32.mxu0 %v198
        %298 = vmatmul.mubr.f32.gmra.mrb[0].mxu0 %v197
        %v299 = vpop.f32.mrb[0].mxu0
        %v300 = vadd.f32 0.0, %v299
        %v301 = vpop.f32.mrb[0].mxu0
        %302 = vmatprep.mubr.f32.mxu0 %v200
        %303 = vmatmul.mubr.f32.gmra.mrb[0].mxu0 %v199
        %v304 = vpop.f32.mrb[0].mxu0
        %v305 = vadd.f32 0.0, %v304
        %v306 = vpop.f32.mrb[0].mxu0
        %307 = vdwg.mxu0
        %v308 = vpack.c.bf16 %v305, %v300
        %v309 = vld [vmem:[%s2] sm:$0x3]
        %v310 = vld [vmem:[%s3] sm:$0x1]
        %v312 = vlaneseq
        %v313 = vshrl.u32 %v312, 7
        %v314 = vsub.s32 0, %v313
        %v315 = vrot.slane %v310, %v314
        %vm317 = vcmask 31744
        %v319 = vsel %vm317, %v308, 0
        %vm321 = vcmask 1041408
        %v323 = vsel %vm321, %v309, 0
        %325 = vmatprep.subr.bf16.mxu0 0
        %326 = vmatpush1.bf16.msra.mxu0 %v323
        %327 = vmatprep.subr.bf16.mxu0 0
        %328 = vmatpush1.bf16.msra.mxu0 0
        %329 = vmatprep.subr.bf16.mxu0 0
        %330 = vmatpush1.bf16.msra.mxu0 0
        %331 = vmatprep.subr.bf16.mxu0 0
        %332 = vmatpush1.bf16.msra.mxu0 0
        %333 = vmatprep.subr.bf16.mxu0 0
        %334 = vmatpush1.bf16.msra.mxu0 0
        %335 = vmatprep.subr.bf16.mxu0 0
        %336 = vmatpush1.bf16.msra.mxu0 0
        %337 = vmatprep.subr.bf16.mxu0 0
        %338 = vmatpush1.bf16.msra.mxu0 0
        %339 = vmatprep.subr.bf16.mxu0 0
        %340 = vmatpush1.bf16.msra.mxu0 0
        %341 = vmatprep.subr.bf16.mxu0 0
        %342 = vmatpush1.bf16.msra.mxu0 0
        %343 = vmatprep.subr.bf16.mxu0 0
        %344 = vmatpush1.bf16.msra.mxu0 0
        %345 = vmatprep.subr.bf16.mxu0 0
        %346 = vmatpush1.bf16.msra.mxu0 0
        %347 = vmatprep.subr.bf16.mxu0 0
        %348 = vmatpush1.bf16.msra.mxu0 0
        %349 = vmatprep.subr.bf16.mxu0 0
        %350 = vmatpush1.bf16.msra.mxu0 0
        %351 = vmatprep.subr.bf16.mxu0 0
        %352 = vmatpush1.bf16.msra.mxu0 0
        %353 = vmatprep.subr.bf16.mxu0 0
        %354 = vmatpush1.bf16.msra.mxu0 0
        %355 = vmatprep.subr.bf16.mxu0 0
        %356 = vmatpush1.bf16.msra.mxu0 0
        %357 = vmatprep.mubr.bf16.mxu0 0
        %358 = vmatmul.mubr.bf16.gmra.mrb[0].mxu0 %v319
        %v359 = vpop.f32.mrb[0].mxu0
        %v360 = vadd.f32 %v315, %v359
        %v361 = vpop.f32.mrb[0].mxu0
        %v362 = vpop.f32.mrb[0].mxu0
        %v363 = vadd.f32 %v315, %v362
        %v364 = vpop.f32.mrb[0].mxu0
        %365 = vdwg.mxu0
        %v366 = vmax.f32 %v360, 0.0
        %v367 = vmax.f32 %v363, 0.0
        %v368 = vpack.c.bf16 %v367, %v366
        %v370 = vunpack.c.l.b16 %v368
        %v371 = vunpack.c.h.b16 %v368
        %v372 = vpack.c.b16 %v370, %v370
        %v373 = vpack.c.b16 %v371, %v371
        %376 = vst [vmem:[%s190] sm:$0xf] %v372
        %377 = vst [vmem:[%s190 + $0x4] sm:$0xf] %v373
        %s378 = sand.u32 %s115, 1
        %s379 = scalar_lea.sflag [#allocation3], %s378
        %s380 = sand.u32 %s115, 1
        %s381 = smul.addr %s380, 8
        %s382 = scalar_lea.vmem [#allocation2], %s381
        // Predicated region
        $region37: #{tpu_custom_call.1} parent=35 // pred_check
          %p383 = pneg %p125
        $region38: #{tpu_custom_call.1} parent=35 // pred_check_branch
          %385 = sbr.rel (%p383) target = $region40
        $region39: #{tpu_custom_call.1} parent=35 // pred_region
          %s387 = ssub.s32 128, 128
          %388 = vsyncadd %s379, %s387
          %s389 = smul.addr %s18, 2
          %s390 = smul.addr %s389, 64
          %s391 = scalar_lea.hbm %s4, %s390
          %s392 = sshll.u32 %s382, 4
          %s393 = int_to_ptr.vmem [resolvable:$true] %s392
          %398 = dma.vmem_to_hbm [thread:$0]  %s393, 128, %s391, %s379, 64, 64, 4
        $region40: #{tpu_custom_call.1} parent=35 // pred_fallthru
          _
      $region36: #{tpu_custom_call.1} parent=5 // pred_fallthru
        _
      %p399 = scmp.le.s32.totalorder 2, %s13
      // Predicated region
      $region41: #{tpu_custom_call.1} parent=5 // pred_check
        %p400 = pneg %p399
      $region42: #{tpu_custom_call.1} parent=5 // pred_check_branch
        %402 = sbr.rel (%p400) target = $region44
      $region43: #{tpu_custom_call.1} parent=5 // pred_region
        %s403 = ssub.s32 %s13, 2
        // Predicated region
        $region45: #{tpu_custom_call.1} parent=43 // pred_check
          %p404 = pneg %p131
        $region46: #{tpu_custom_call.1} parent=43 // pred_check_branch
          %406 = sbr.rel (%p404) target = $region48
        $region47: #{tpu_custom_call.1} parent=43 // pred_region
          %s407 = sand.u32 %s116, 1
          %s408 = scalar_lea.sflag [#allocation3], %s407
          %s409 = sand.u32 %s116, 1
          %s410 = smul.addr %s409, 8
          %s411 = scalar_lea.vmem [#allocation2], %s410
          %412 = dma.done %s408, 128
        $region48: #{tpu_custom_call.1} parent=43 // pred_fallthru
          _
      $region44: #{tpu_custom_call.1} parent=5 // pred_fallthru
        _
    $region6: #{tpu_custom_call.1} parent=1 // loop_footer
      %s17 = sadd.s32 1, %s13
    $region7: #{tpu_custom_call.1} parent=1 // loop_footer_branch
      %12 = sbr.rel target = $region3
    $region8: #{tpu_custom_call.1} parent=1 // loop_exit
      _
    %413 = vsyncpa [#allocation3], 1
    %s414 = scalar_lea.sflag [#allocation3], 1
    %415 = vsyncpa %s414, 1

</llo_original>
